<compile_context>
chip_gen: v6e
topology: v6e:2x2x1
jax: 0.10.0
libtpu: 0.0.40
codegen_flags: <defaults>
</compile_context>

<pallas_src>
import functools

import jax
import jax.numpy as jnp
from jax.experimental import pallas as pl
from jax.experimental.pallas import tpu as pltpu

_LANE = 128


def _tpu_generation():
    """Best-effort TPU generation (4/5/6/7) from device_kind; None if unknown."""
    try:
        kind = jax.devices()[0].device_kind.lower()
    except Exception:
        return None
    for gen in (7, 6, 5, 4):
        if f"v{gen}" in kind or f"tpu{gen}" in kind:
            return gen
    return None


def _tanh_kernel(x_ref, o_ref, *, compute_dtype):
    # Whole-tile elementwise tanh (EUP path).
    x = x_ref[...]
    if compute_dtype is not None and x.dtype != compute_dtype:
        x = x.astype(compute_dtype)
    o_ref[...] = jnp.tanh(x).astype(o_ref.dtype)


def _tanh_pallas_2d(x2, *, tile_bytes, vmem_limit, compute_dtype, want_two_blocks):
    """tanh over a lane-dense (rows, lane) slab via a 1-D parallel grid."""
    rows, lane = x2.shape
    itemsize = jnp.dtype(x2.dtype).itemsize
    # Sublane packing: 8 for 32-bit, 16 for 16-bit, 32 for 8-bit dtypes.
    pack = 8 * max(1, 4 // itemsize)

    # Row-block size: ~tile_bytes contiguous slabs, packing-aligned (or the
    # full row extent, which is always a legal block shape).
    tr = max(1, tile_bytes // (lane * itemsize))
    if tr >= rows:
        tr = rows
        if want_two_blocks and rows >= 2 * pack:
            # On v7x, give the (per-TC bandwidth) megacore at least 2 blocks.
            half = -(-rows // 2)
            tr = min(rows, ((half + pack - 1) // pack) * pack)
    else:
        tr = max(pack, (tr // pack) * pack)

    grid = (pl.cdiv(rows, tr),)  # ragged final block is masked by Pallas
    n = rows * lane

    return pl.pallas_call(
        functools.partial(_tanh_kernel, compute_dtype=compute_dtype),
        out_shape=jax.ShapeDtypeStruct((rows, lane), x2.dtype),
        grid=grid,
        in_specs=[pl.BlockSpec((tr, lane), lambda i: (i, 0))],
        out_specs=pl.BlockSpec((tr, lane), lambda i: (i, 0)),
        compiler_params=pltpu.CompilerParams(
            # TODO(synk): on v7x, verify in a trace that both TensorCores
            # stream HBM; if not, switch this axis to pltpu.CORE_PARALLEL.
            dimension_semantics=("parallel",),
            vmem_limit_bytes=vmem_limit,
        ),
        cost_estimate=pl.CostEstimate(
            flops=0,
            transcendentals=n,
            bytes_accessed=2 * n * itemsize,
        ),
    )(x2)


def tanh_pallas(x, *, min_pallas_bytes=2 * 1024 * 1024):
    """Elementwise tanh via a lane-dense, large-tile Pallas kernel."""
    orig_shape = x.shape
    orig_dtype = x.dtype
    n = x.size
    if n == 0:
        return jnp.tanh(x)
    if not jnp.issubdtype(orig_dtype, jnp.floating):
        # aten.tanh promotes integer inputs to float; let XLA handle that.
        return jnp.tanh(x)

    itemsize = jnp.dtype(orig_dtype).itemsize
    nbytes = n * itemsize

    # Small-tensor fast path: pallas_call / pipeline setup dominates below
    # roughly one block of data; XLA's fused tanh is strictly cheaper there.
    if nbytes < min_pallas_bytes:
        return jnp.tanh(x)

    gen = _tpu_generation()

    # Generation-aware block size / scoped-VMEM budget (double-buffered
    # in + out footprint = 4x block).
    if gen is None:
        tile_bytes, vmem_limit = 4 * 1024 * 1024, 32 * 1024 * 1024
    elif gen >= 7:
        tile_bytes, vmem_limit = 5 * 1024 * 1024, 44 * 1024 * 1024
    else:
        tile_bytes, vmem_limit = 8 * 1024 * 1024, 64 * 1024 * 1024

    # Compute dtype: f32 inputs compute natively; bf16 computes natively on
    # v6e/v7x (bf16 EUP); everything else (f16, bf16-on-v5e, unknown chip)
    # upcasts to f32 inside the kernel while keeping narrow HBM traffic.
    if orig_dtype in (jnp.float32, jnp.float64):
        compute_dtype = None
    elif orig_dtype == jnp.bfloat16 and gen is not None and gen >= 6:
        compute_dtype = None
    else:
        compute_dtype = jnp.float32

    flat = x.reshape(-1)

    # Ragged sizes: run the kernel on the 128-aligned prefix only; the short
    # (<128-element) tail is computed with plain jnp.tanh and stitched back.
    n_aligned = (n // _LANE) * _LANE
    tail = None
    if n_aligned < n:
        if n_aligned == 0:
            return jnp.tanh(x)
        tail = flat[n_aligned:]
        flat = flat[:n_aligned]

    # Wide, lane-dense last dim (multiple of 128) dividing the aligned count.
    lane = _LANE
    for cand in (4096, 2048, 1024, 512, 256):
        if n_aligned % cand == 0:
            lane = cand
            break
    rows = n_aligned // lane
    x2 = flat.reshape(rows, lane)

    out2 = _tanh_pallas_2d(
        x2,
        tile_bytes=tile_bytes,
        vmem_limit=vmem_limit,
        compute_dtype=compute_dtype,
        want_two_blocks=(gen is not None and gen >= 7),
    )

    out_flat = out2.reshape(-1)
    if tail is not None:
        out_flat = jnp.concatenate([out_flat, jnp.tanh(tail)])
    return out_flat.reshape(orig_shape)


if __name__ == "__main__":
    key = jax.random.PRNGKey(0)
    # Small NCHW-like input consistent with a generic tensor forward.
    x = jax.random.normal(key, (2, 4, 16, 16), dtype=jnp.float32)
    y_ref = jnp.tanh(x)

    # Force the Pallas path even for this small test tensor.
    y = jax.block_until_ready(tanh_pallas(x, min_pallas_bytes=0))
    assert y.shape == x.shape and y.dtype == x.dtype
    assert jnp.allclose(y, y_ref, atol=1e-6, rtol=1e-6)

    # Default wrapper (small-size fast path).
    y2 = jax.block_until_ready(tanh_pallas(x))
    assert jnp.allclose(y2, y_ref, atol=1e-6, rtol=1e-6)

    # Ragged size (not a multiple of 128): aligned prefix through the kernel,
    # tail stitched back.
    x_ragged = jax.random.normal(key, (1037,), dtype=jnp.float32)
    y3 = jax.block_until_ready(tanh_pallas(x_ragged, min_pallas_bytes=0))
    assert y3.shape == x_ragged.shape and y3.dtype == x_ragged.dtype
    assert jnp.allclose(y3, jnp.tanh(x_ragged), atol=1e-6, rtol=1e-6)

    print("KERNEL_OK")
</pallas_src>

<mosaic_0001>
module attributes {stable_mosaic.version = 11 : i64} {
  func.func @_tanh_kernel(%arg0: i32, %arg1: memref<1x2048xf32, #tpu.memory_space<vmem>>, %arg2: memref<1x2048xf32, #tpu.memory_space<vmem>>) attributes {dimension_semantics = [#tpu.dimension_semantics<parallel>], iteration_bounds = array<i64: 1>, scalar_prefetch = 0 : i64, scratch_operands = 0 : i64, tpu.core_type = #tpu.core_type<tc>, window_params = [{transform_indices = @transform_0, window_bounds = array<i64: 1, 2048>}, {transform_indices = @transform_1, window_bounds = array<i64: 1, 2048>}]} {
    %c0 = arith.constant 0 : index
    %c0_0 = arith.constant 0 : index
    %0 = vector.load %arg1[%c0, %c0_0] : memref<1x2048xf32, #tpu.memory_space<vmem>>, vector<1x2048xf32>
    %1 = math.tanh %0 : vector<1x2048xf32>
    %c0_1 = arith.constant 0 : index
    %c0_2 = arith.constant 0 : index
    %2 = vector.load %arg2[%c0_1, %c0_2] : memref<1x2048xf32, #tpu.memory_space<vmem>>, vector<1x2048xf32>
    tpu.vector_store %arg2[%c0_1, %c0_2], %1 {strides = array<i32>} : memref<1x2048xf32, #tpu.memory_space<vmem>>, vector<1x2048xf32>,
    return
  }
  func.func @transform_0(%arg0: i32) -> (i32, i32) {
    %c0_i32 = arith.constant 0 : i32
    %c0_i32_0 = arith.constant 0 : i32
    return %arg0, %c0_i32 : i32, i32
  }
  func.func @transform_1(%arg0: i32) -> (i32, i32) {
    %c0_i32 = arith.constant 0 : i32
    %c0_i32_0 = arith.constant 0 : i32
    return %arg0, %c0_i32 : i32, i32
  }
}

</mosaic_0001>

<llo_original>
// kernel: tpu_custom_call.1
$region0: #{tpu_custom_call.1}
  #allocation0 [shape = 'u32[]', space=smem, size = 0x4, offset = 0x4, fixed_abs, tag = 'smem constant byte address 0x4 - core index']
  #allocation1 [shape = 'u32[144,128]{1,0:T(1,128)}', space=vmem, size = 0x12000, scoped, tag = 'internal scratch']
  %s0 = inlined_call_operand.hbm [shape: f32[1,2048], index: 0, kind: input, shape index: {}]
  %s1 = inlined_call_operand.hbm [shape: f32[1,2048], index: 1, kind: output, shape index: {}]
  %s2 = sld [smem:[#allocation0]]
  $region18: #{tpu_custom_call.1} parent=0
    _
  %s4 = ssub.s32 1, %s2
  %s5 = scalar_select 0, %s4, %s2
  $region1: #{tpu_custom_call.1} parent=0
    #allocation2 [shape = 'u8[8192]{0}', space=vmem, size = 0x2000, scoped, tag = 'input window, operand 0, single buffered']
    #allocation3 [shape = 's32[1]{0}', space=sflag, size = 0x4, scoped, tag = 'scoped memory for tpu_custom_call.1']
    #allocation4 [shape = 's32[1]{0}', space=sflag, size = 0x4, scoped, tag = 'scoped memory for tpu_custom_call.1']
    #allocation5 [shape = 'u8[8192]{0}', space=vmem, size = 0x2000, scoped, tag = 'output window, operand 0, single buffered']
    %6 = vsyncpa [#allocation3], 0
    %7 = vsyncpa [#allocation4], 0
    // Predicated region
    $region2: #{tpu_custom_call.1} parent=1 // pred_check
      _
    $region3: #{tpu_custom_call.1} parent=1 // pred_check_branch
      %9 = sbr.rel (0) target = $region5
    $region4: #{tpu_custom_call.1} parent=1 // pred_region
      %s11 = ssub.s32 256, 256
      %12 = vsyncadd [#allocation3], %s11
      %s14 = sshll.u32 [#allocation2], 4
      %s15 = int_to_ptr.vmem [resolvable:$true] %s14
      %17 = dma.hbm_to_vmem [thread:$0]  %s0, 256, %s15, [#allocation3]
    $region5: #{tpu_custom_call.1} parent=1 // pred_fallthru
      _
    // Predicated region
    $region6: #{tpu_custom_call.1} parent=1 // pred_check
      _
    $region7: #{tpu_custom_call.1} parent=1 // pred_check_branch
      %19 = sbr.rel (0) target = $region9
    $region8: #{tpu_custom_call.1} parent=1 // pred_region
      %20 = dma.done [#allocation3], 256
    $region9: #{tpu_custom_call.1} parent=1 // pred_fallthru
      _
    %v21 = vld [vmem:[#allocation2] sm:$0xff]
    %v22 = vld [vmem:[#allocation2 + $0x8] sm:$0xff]
    %v23 = vtanh.pop %v21
    %v24 = vtanh.pop %v22
    %25 = vst [vmem:[#allocation5] sm:$0xff] %v23
    %26 = vst [vmem:[#allocation5 + $0x8] sm:$0xff] %v24
    // Predicated region
    $region10: #{tpu_custom_call.1} parent=1 // pred_check
      _
    $region11: #{tpu_custom_call.1} parent=1 // pred_check_branch
      %28 = sbr.rel (0) target = $region13
    $region12: #{tpu_custom_call.1} parent=1 // pred_region
      %s30 = ssub.s32 256, 256
      %31 = vsyncadd [#allocation4], %s30
      %s33 = sshll.u32 [#allocation5], 4
      %s34 = int_to_ptr.vmem [resolvable:$true] %s33
      %36 = dma.vmem_to_hbm [thread:$0]  %s34, 256, %s1, [#allocation4]
    $region13: #{tpu_custom_call.1} parent=1 // pred_fallthru
      _
    // Predicated region
    $region14: #{tpu_custom_call.1} parent=1 // pred_check
      _
    $region15: #{tpu_custom_call.1} parent=1 // pred_check_branch
      %38 = sbr.rel (0) target = $region17
    $region16: #{tpu_custom_call.1} parent=1 // pred_region
      %39 = dma.done [#allocation4], 256
    $region17: #{tpu_custom_call.1} parent=1 // pred_fallthru
      _
    %40 = vsyncpa [#allocation3], 1
    %41 = vsyncpa [#allocation4], 1

</llo_original>
